<compile_context>
chip_gen: v7x
topology: tpu7x:2x2x1
jax: 0.10.0
libtpu: 0.0.40
codegen_flags: <defaults>
</compile_context>

<pallas_src>
import functools

import jax
import jax.numpy as jnp
import numpy as np
from jax import lax
from jax.experimental import pallas as pl
from jax.experimental.pallas import tpu as pltpu

_EPS = 1e-12  # eps used by F.normalize(p=1)


def _con_loss_kernel(x_ref, wcol_ref, wrow_ref, gidr_ref, gidc_ref,
                     out_ref, xn_ref, *, tq):
    # x_ref   : VMEM f32[Mp, Dp]  raw features (Mp = padded 4N, Dp = padded D), resident
    # wcol_ref: VMEM f32[1, Mp]   column weight: group validity flag
    # wrow_ref: VMEM f32[Mp, 1]   row weight: validity * 1/(N^2 * #valid-groups)
    # gidr_ref: VMEM f32[Mp, 1]   group id per row (padded rows: -1)
    # gidc_ref: VMEM f32[1, Mp]   group id per column (padded cols: -1)
    # out_ref : SMEM f32[1]       scalar loss accumulator
    # xn_ref  : VMEM f32[Mp, Dp]  scratch holding the L1-normalized features
    i = pl.program_id(0)

    @pl.when(i == 0)
    def _init():
        out_ref[0] = jnp.float32(0.0)
        xf = x_ref[...]
        xn_ref[...] = xf / jnp.maximum(
            jnp.sum(jnp.abs(xf), axis=-1, keepdims=True), _EPS)

    r0 = pl.multiple_of(i * tq, tq)
    xr_n = xn_ref[pl.ds(r0, tq), :]                                # (tq, Dp)
    xf_n = xn_ref[...]                                             # (Mp, Dp)

    # One fused Gram-matrix tile: (tq, Dp) x (Mp, Dp)^T -> (tq, Mp) on the MXU.
    s = lax.dot_general(xr_n, xf_n, (((1,), (1,)), ((), ())),
                        preferred_element_type=jnp.float32)

    # Stable softplus sweep (EUP) over the tile.
    sp = jnp.maximum(s, 0.0) + jnp.log1p(jnp.exp(-jnp.abs(s)))

    wc = wcol_ref[...]                                             # (1, Mp)
    wr = wrow_ref[pl.ds(r0, tq), :]                                # (tq, 1)
    gr = gidr_ref[pl.ds(r0, tq), :]                                # (tq, 1)
    gc = gidc_ref[...]                                             # (1, Mp)
    self_blk = (gr == gc).astype(jnp.float32)                      # self-sim block mask

    # BCE(target=1) on the self block = softplus(x) - x; elsewhere = softplus(x).
    contrib = wr * (wc * sp - self_blk * s)
    out_ref[0] = out_ref[0] + jnp.sum(contrib)                     # single weighted reduce


def con_loss(feat_q, mask_l):
    """feat_q: (4, 1, N, D) float32; mask_l: int array with labels in {0..4}."""
    g, b, n, d = feat_q.shape
    assert g == 4 and b == 1, "module semantics assume 4 groups and batch == 1"
    m = 4 * n

    # Row-tile size / padded row count (keep everything a multiple of 8 sublanes).
    if m <= 1024:
        mp = max(8, ((m + 7) // 8) * 8)
        tq = mp
    else:
        tq = 256
        mp = ((m + tq - 1) // tq) * tq

    # Flatten to (4N, D) and zero-pad: rows -> mp, feature dim -> lane-dense 128 multiple.
    f = feat_q.reshape(m, d).astype(jnp.float32)
    dp = max(128, ((d + 127) // 128) * 128)
    f = jnp.pad(f, ((0, mp - m), (0, dp - d)))

    # Validity: PyTorch skips group ii when count(mask_l == ii+1) <= 1.
    labels = jnp.arange(1, 5, dtype=mask_l.dtype)
    counts = jnp.sum(mask_l[None, :] == labels[:, None], axis=1)
    valid = (counts >= 2).astype(jnp.float32)                      # (4,)

    # Per-element weight = v_row * v_col / (N^2 * K), K = #valid groups.
    k_valid = jnp.sum(valid)
    inv_scale = 1.0 / (jnp.float32(n * n) * jnp.maximum(k_valid, 1.0))

    vexp = jnp.repeat(valid, n)                                    # (4N,)
    wcol = jnp.pad(vexp, (0, mp - m)).reshape(1, mp)
    wrow = jnp.pad(vexp * inv_scale, (0, mp - m)).reshape(mp, 1)
    gid = jnp.repeat(jnp.arange(4, dtype=jnp.float32), n)
    gid = jnp.pad(gid, (0, mp - m), constant_values=-1.0)
    gid_r = gid.reshape(mp, 1)
    gid_c = gid.reshape(1, mp)

    grid = (mp // tq,)
    # TODO(synk): for very large N also split the column axis into partial sums so
    # both v7x TensorCores can be engaged (single SMEM accumulator forces "arbitrary").

    kernel = functools.partial(_con_loss_kernel, tq=tq)

    out = pl.pallas_call(
        kernel,
        out_shape=jax.ShapeDtypeStruct((1,), jnp.float32),
        grid=grid,
        in_specs=[
            pl.BlockSpec((mp, dp), lambda i: (0, 0)),   # features (resident)
            pl.BlockSpec((1, mp), lambda i: (0, 0)),    # column validity
            pl.BlockSpec((mp, 1), lambda i: (0, 0)),    # row validity * inv_scale
            pl.BlockSpec((mp, 1), lambda i: (0, 0)),    # row group ids
            pl.BlockSpec((1, mp), lambda i: (0, 0)),    # column group ids
        ],
        out_specs=pl.BlockSpec(memory_space=pltpu.MemorySpace.SMEM),
        scratch_shapes=[pltpu.VMEM((mp, dp), jnp.float32)],
        compiler_params=pltpu.CompilerParams(
            dimension_semantics=("arbitrary",)),
    )(f, wcol, wrow, gid_r, gid_c)
    return out[0]


def con_loss_ref(feat_q, mask_l):
    """Pure-JAX reference mirroring the PyTorch forward."""
    f = feat_q[:, 0].astype(jnp.float32)                           # (4, N, D)
    denom = jnp.maximum(jnp.sum(jnp.abs(f), axis=-1, keepdims=True), _EPS)
    fn = f / denom
    counts = [int(jnp.sum(mask_l == ii + 1)) for ii in range(4)]
    valid = [c >= 2 for c in counts]
    n = fn.shape[1]
    loss = jnp.float32(0.0)
    for ii in range(4):
        if not valid[ii]:
            continue
        blocks = [fn[ii] @ fn[ii].T]
        for i in range(4):
            if i == ii or not valid[i]:
                continue
            blocks.append(fn[ii] @ fn[i].T)
        logits = jnp.concatenate(blocks, axis=1)                   # (N, N*K)
        target = jnp.concatenate(
            [jnp.ones((n, n), jnp.float32),
             jnp.zeros((n, logits.shape[1] - n), jnp.float32)], axis=1)
        l = jnp.maximum(logits, 0.0) - logits * target + jnp.log1p(jnp.exp(-jnp.abs(logits)))
        loss = loss + jnp.mean(l)
    return loss


if __name__ == "__main__":
    key = jax.random.PRNGKey(0)
    k1, _ = jax.random.split(key)

    G, B, N, D = 4, 1, 8, 32
    feat_q = jax.random.normal(k1, (G, B, N, D), dtype=jnp.float32)
    # labels: group 3 (label 3) appears only once -> skipped, matching PyTorch control flow
    mask_l = jnp.array([1, 1, 2, 2, 2, 3, 4, 4], dtype=jnp.int32)

    loss = jax.block_until_ready(con_loss(feat_q, mask_l))
    ref = jax.block_until_ready(con_loss_ref(feat_q, mask_l))
    np.testing.assert_allclose(np.asarray(loss), np.asarray(ref), rtol=1e-4, atol=1e-5)

    print("KERNEL_OK")
</pallas_src>

<mosaic_0001>
module attributes {stable_mosaic.version = 11 : i64} {
  func.func @_con_loss_kernel(%arg0: i32, %arg1: memref<32x128xf32, #tpu.memory_space<vmem>>, %arg2: memref<1x32xf32, #tpu.memory_space<vmem>>, %arg3: memref<32x1xf32, #tpu.memory_space<vmem>>, %arg4: memref<32x1xf32, #tpu.memory_space<vmem>>, %arg5: memref<1x32xf32, #tpu.memory_space<vmem>>, %arg6: memref<1xf32, #tpu.memory_space<smem>>, %arg7: memref<32x128xf32, #tpu.memory_space<vmem>>) attributes {dimension_semantics = [#tpu.dimension_semantics<arbitrary>], iteration_bounds = array<i64: 1>, scalar_prefetch = 0 : i64, scratch_operands = 1 : i64, tpu.core_type = #tpu.core_type<tc>, window_params = [{pipeline_mode = #tpu.pipeline_mode<synchronous>, transform_indices = @transform_0, window_bounds = array<i64: 32, 128>}, {pipeline_mode = #tpu.pipeline_mode<synchronous>, transform_indices = @transform_1, window_bounds = array<i64: 1, 32>}, {pipeline_mode = #tpu.pipeline_mode<synchronous>, transform_indices = @transform_2, window_bounds = array<i64: 32, 1>}, {pipeline_mode = #tpu.pipeline_mode<synchronous>, transform_indices = @transform_3, window_bounds = array<i64: 32, 1>}, {pipeline_mode = #tpu.pipeline_mode<synchronous>, transform_indices = @transform_4, window_bounds = array<i64: 1, 32>}, {transform_indices = @transform_5, window_bounds = array<i64: 1>}]} {
    %c0_i32 = arith.constant 0 : i32
    %0 = arith.cmpi eq, %arg0, %c0_i32 : i32
    %1 = arith.extui %0 : i1 to i32
    %c0_i32_0 = arith.constant 0 : i32
    %2 = arith.cmpi ne, %1, %c0_i32_0 : i32
    scf.if %2 {
      %cst_14 = arith.constant 0.000000e+00 : f32
      %c0_15 = arith.constant 0 : index
      %41 = memref.load %arg6[%c0_15] : memref<1xf32, #tpu.memory_space<smem>>
      memref.store %cst_14, %arg6[%c0_15] : memref<1xf32, #tpu.memory_space<smem>>
      %c0_16 = arith.constant 0 : index
      %c0_17 = arith.constant 0 : index
      %42 = vector.load %arg1[%c0_16, %c0_17] : memref<32x128xf32, #tpu.memory_space<vmem>>, vector<32x128xf32>
      %43 = math.absf %42 : vector<32x128xf32>
      %cst_18 = arith.constant dense<0.000000e+00> : vector<32xf32>
      %44 = vector.multi_reduction <add>, %43, %cst_18 [1] : vector<32x128xf32> to vector<32xf32>
      %45 = vector.shape_cast %44 : vector<32xf32> to vector<32x1xf32>
      %cst_19 = arith.constant 9.99999996E-13 : f32
      %46 = vector.broadcast %cst_19 : f32 to vector<32x1xf32>
      %47 = arith.maximumf %45, %46 : vector<32x1xf32>
      %48 = vector.broadcast %47 : vector<32x1xf32> to vector<32x128xf32>
      %49 = arith.divf %42, %48 : vector<32x128xf32>
      %c0_20 = arith.constant 0 : index
      %c0_21 = arith.constant 0 : index
      %50 = vector.load %arg7[%c0_20, %c0_21] : memref<32x128xf32, #tpu.memory_space<vmem>>, vector<32x128xf32>
      tpu.vector_store %arg7[%c0_20, %c0_21], %49 {strides = array<i32>} : memref<32x128xf32, #tpu.memory_space<vmem>>, vector<32x128xf32>,
    } else {
    }
    %c32_i32 = arith.constant 32 : i32
    %3 = arith.muli %arg0, %c32_i32 : i32
    %4 = tpu.assume_multiple %3, 32 : i32
    %5 = arith.index_cast %4 : i32 to index
    %c0 = arith.constant 0 : index
    %6 = vector.load %arg7[%5, %c0] : memref<32x128xf32, #tpu.memory_space<vmem>>, vector<32x128xf32>
    %c0_1 = arith.constant 0 : index
    %c0_2 = arith.constant 0 : index
    %7 = vector.load %arg7[%c0_1, %c0_2] : memref<32x128xf32, #tpu.memory_space<vmem>>, vector<32x128xf32>
    %cst = arith.constant dense<0.000000e+00> : vector<32x32xf32>
    %8 = tpu.matmul %6, %7, %cst {dimension_numbers = #tpu.dot_dimension_numbers<[1], [1], [0], [0], [0, 0, 1, 0], [], []>} : vector<32x128xf32>, vector<32x128xf32>, vector<32x32xf32> -> vector<32x32xf32>
    %cst_3 = arith.constant 0.000000e+00 : f32
    %9 = vector.broadcast %cst_3 : f32 to vector<32x32xf32>
    %10 = arith.maximumf %8, %9 : vector<32x32xf32>
    %11 = math.absf %8 : vector<32x32xf32>
    %cst_4 = arith.constant 0.000000e+00 : f32
    %12 = vector.broadcast %cst_4 : f32 to vector<32x32xf32>
    %13 = arith.subf %12, %11 : vector<32x32xf32>
    %14 = math.exp %13 : vector<32x32xf32>
    %15 = math.log1p %14 : vector<32x32xf32>
    %16 = arith.addf %10, %15 : vector<32x32xf32>
    %c0_5 = arith.constant 0 : index
    %c0_6 = arith.constant 0 : index
    %17 = vector.load %arg2[%c0_5, %c0_6] : memref<1x32xf32, #tpu.memory_space<vmem>>, vector<1x32xf32>
    %18 = arith.index_cast %4 : i32 to index
    %c0_7 = arith.constant 0 : index
    %19 = vector.load %arg3[%18, %c0_7] : memref<32x1xf32, #tpu.memory_space<vmem>>, vector<32x1xf32>
    %20 = arith.index_cast %4 : i32 to index
    %c0_8 = arith.constant 0 : index
    %21 = vector.load %arg4[%20, %c0_8] : memref<32x1xf32, #tpu.memory_space<vmem>>, vector<32x1xf32>
    %c0_9 = arith.constant 0 : index
    %c0_10 = arith.constant 0 : index
    %22 = vector.load %arg5[%c0_9, %c0_10] : memref<1x32xf32, #tpu.memory_space<vmem>>, vector<1x32xf32>
    %23 = vector.broadcast %21 : vector<32x1xf32> to vector<32x32xf32>
    %24 = vector.broadcast %22 : vector<1x32xf32> to vector<32x32xf32>
    %25 = arith.cmpf oeq, %23, %24 : vector<32x32xf32>
    %26 = arith.extui %25 : vector<32x32xi1> to vector<32x32xi32>
    %27 = arith.sitofp %26 : vector<32x32xi32> to vector<32x32xf32>
    %28 = vector.broadcast %17 : vector<1x32xf32> to vector<32x32xf32>
    %29 = arith.mulf %28, %16 : vector<32x32xf32>
    %30 = arith.mulf %27, %8 : vector<32x32xf32>
    %31 = arith.subf %29, %30 : vector<32x32xf32>
    %32 = vector.broadcast %19 : vector<32x1xf32> to vector<32x32xf32>
    %33 = arith.mulf %32, %31 : vector<32x32xf32>
    %c0_11 = arith.constant 0 : index
    %34 = memref.load %arg6[%c0_11] : memref<1xf32, #tpu.memory_space<smem>>
    %35 = vector.shape_cast %33 : vector<32x32xf32> to vector<1x32x32xf32>
    %cst_12 = arith.constant dense<0.000000e+00> : vector<1xf32>
    %36 = vector.multi_reduction <add>, %35, %cst_12 [1, 2] : vector<1x32x32xf32> to vector<1xf32>
    %37 = vector.shape_cast %36 : vector<1xf32> to vector<1x1x1xf32>
    %38 = vector.extract %37[0, 0, 0] : f32 from vector<1x1x1xf32>
    %39 = arith.addf %34, %38 : f32
    %c0_13 = arith.constant 0 : index
    %40 = memref.load %arg6[%c0_13] : memref<1xf32, #tpu.memory_space<smem>>
    memref.store %39, %arg6[%c0_13] : memref<1xf32, #tpu.memory_space<smem>>
    return
  }
  func.func @transform_0(%arg0: i32) -> (i32, i32) {
    %c0_i32 = arith.constant 0 : i32
    %c0_i32_0 = arith.constant 0 : i32
    %c0_i32_1 = arith.constant 0 : i32
    return %c0_i32, %c0_i32_0 : i32, i32
  }
  func.func @transform_1(%arg0: i32) -> (i32, i32) {
    %c0_i32 = arith.constant 0 : i32
    %c0_i32_0 = arith.constant 0 : i32
    %c0_i32_1 = arith.constant 0 : i32
    return %c0_i32, %c0_i32_0 : i32, i32
  }
  func.func @transform_2(%arg0: i32) -> (i32, i32) {
    %c0_i32 = arith.constant 0 : i32
    %c0_i32_0 = arith.constant 0 : i32
    %c0_i32_1 = arith.constant 0 : i32
    return %c0_i32, %c0_i32_0 : i32, i32
  }
  func.func @transform_3(%arg0: i32) -> (i32, i32) {
    %c0_i32 = arith.constant 0 : i32
    %c0_i32_0 = arith.constant 0 : i32
    %c0_i32_1 = arith.constant 0 : i32
    return %c0_i32, %c0_i32_0 : i32, i32
  }
  func.func @transform_4(%arg0: i32) -> (i32, i32) {
    %c0_i32 = arith.constant 0 : i32
    %c0_i32_0 = arith.constant 0 : i32
    %c0_i32_1 = arith.constant 0 : i32
    return %c0_i32, %c0_i32_0 : i32, i32
  }
  func.func @transform_5(%arg0: i32) -> i32 {
    %c0_i32 = arith.constant 0 : i32
    %c0_i32_0 = arith.constant 0 : i32
    return %c0_i32 : i32
  }
}

</mosaic_0001>

<llo_original>
// kernel: tpu_custom_call.1
$region0: #{tpu_custom_call.1}
  #allocation0 [shape = 'u32[]', space=smem, size = 0x4, offset = 0x4, fixed_abs, tag = 'smem constant byte address 0x4 - core index']
  #allocation1 [shape = 'u32[144,128]{1,0:T(1,128)}', space=vmem, size = 0x12000, scoped, tag = 'internal scratch']
  #allocation2 [shape = 'f32[32,128]{1,0:T(8,128)}', space=vmem, size = 0x4000, scoped, tag = 'scratch operand']
  %s0 = inlined_call_operand.vmem [shape: f32[32,128], index: 0, kind: input, shape index: {}]
  %s1 = inlined_call_operand.vmem [shape: f32[1,32], index: 1, kind: input, shape index: {}]
  %s2 = inlined_call_operand.vmem [shape: f32[32,1], index: 2, kind: input, shape index: {}]
  %s3 = inlined_call_operand.vmem [shape: f32[32,1], index: 3, kind: input, shape index: {}]
  %s4 = inlined_call_operand.vmem [shape: f32[1,32], index: 4, kind: input, shape index: {}]
  %s5 = inlined_call_operand.hbm [shape: f32[1], index: 5, kind: output, shape index: {}]
  %s6 = sld [smem:[#allocation0]]
  $region34: #{tpu_custom_call.1} parent=0
    _
  %s8 = ssub.s32 1, %s6
  %s9 = scalar_select 0, %s8, %s6
  $region1: #{tpu_custom_call.1} parent=0
    #allocation3 [shape = 'u8[512]{0}', space=smem, size = 0x200, scoped, tag = 'output window, operand 0, single buffered']
    #allocation4 [shape = 's32[1]{0}', space=sflag, size = 0x4, scoped, tag = 'scoped memory for tpu_custom_call.1']
    %10 = vsyncpa [#allocation4], 0
    // Predicated region
    $region2: #{tpu_custom_call.1} parent=1 // pred_check
      _
    $region3: #{tpu_custom_call.1} parent=1 // pred_check_branch
      %12 = sbr.rel (0) target = $region5
    $region4: #{tpu_custom_call.1} parent=1 // pred_region
      _
    $region5: #{tpu_custom_call.1} parent=1 // pred_fallthru
      _
    // Predicated region
    $region6: #{tpu_custom_call.1} parent=1 // pred_check
      _
    $region7: #{tpu_custom_call.1} parent=1 // pred_check_branch
      %14 = sbr.rel (0) target = $region9
    $region8: #{tpu_custom_call.1} parent=1 // pred_region
      _
    $region9: #{tpu_custom_call.1} parent=1 // pred_fallthru
      _
    // Predicated region
    $region10: #{tpu_custom_call.1} parent=1 // pred_check
      _
    $region11: #{tpu_custom_call.1} parent=1 // pred_check_branch
      %16 = sbr.rel (0) target = $region13
    $region12: #{tpu_custom_call.1} parent=1 // pred_region
      _
    $region13: #{tpu_custom_call.1} parent=1 // pred_fallthru
      _
    // Predicated region
    $region14: #{tpu_custom_call.1} parent=1 // pred_check
      _
    $region15: #{tpu_custom_call.1} parent=1 // pred_check_branch
      %18 = sbr.rel (0) target = $region17
    $region16: #{tpu_custom_call.1} parent=1 // pred_region
      _
    $region17: #{tpu_custom_call.1} parent=1 // pred_fallthru
      _
    // Predicated region
    $region18: #{tpu_custom_call.1} parent=1 // pred_check
      _
    $region19: #{tpu_custom_call.1} parent=1 // pred_check_branch
      %20 = sbr.rel (0) target = $region21
    $region20: #{tpu_custom_call.1} parent=1 // pred_region
      _
    $region21: #{tpu_custom_call.1} parent=1 // pred_fallthru
      _
    %p21 = scmp.eq.s32.totalorder 0, 0
    // Predicated region
    $region22: #{tpu_custom_call.1} parent=1 // pred_check
      %p22 = pneg %p21
    $region23: #{tpu_custom_call.1} parent=1 // pred_check_branch
      %24 = sbr.rel (%p22) target = $region25
    $region24: #{tpu_custom_call.1} parent=1 // pred_region
      %s25 = scalar_lea.smem [#allocation3], 0
      %26 = sst [smem:[%s25]] 0.0
      %v27 = vld [vmem:[%s0] sm:$0xff]
      %v28 = vld [vmem:[%s0 + $0x8] sm:$0xff]
      %v29 = vld [vmem:[%s0 + $0x10] sm:$0xff]
      %v30 = vld [vmem:[%s0 + $0x18] sm:$0xff]
      %v31 = vand.u32 2147483647, %v27
      %v32 = vand.u32 2147483647, %v28
      %v33 = vand.u32 2147483647, %v29
      %v34 = vand.u32 2147483647, %v30
      %35 = vadd.xlane.f32.xlu0 %v31
      %v36 = vpop.xlane.xlu0 %35
      %37 = vadd.xlane.f32.xlu0 %v32
      %v38 = vpop.xlane.xlu0 %37
      %39 = vadd.xlane.f32.xlu0 %v33
      %v40 = vpop.xlane.xlu0 %39
      %41 = vadd.xlane.f32.xlu0 %v34
      %v42 = vpop.xlane.xlu0 %41
      %v43 = vmax.f32 %v36, 1e-12
      %v44 = vmax.f32 %v38, 1e-12
      %v45 = vmax.f32 %v40, 1e-12
      %v46 = vmax.f32 %v42, 1e-12
      %v47 = vrcp.pop %v43
      %v48 = vmul.f32 %v27, %v47
      %v49 = vrcp.pop %v44
      %v50 = vmul.f32 %v28, %v49
      %v51 = vrcp.pop %v45
      %v52 = vmul.f32 %v29, %v51
      %v53 = vrcp.pop %v46
      %v54 = vmul.f32 %v30, %v53
      %55 = vst [vmem:[#allocation2] sm:$0xff] %v48
      %56 = vst [vmem:[#allocation2 + $0x8] sm:$0xff] %v50
      %57 = vst [vmem:[#allocation2 + $0x10] sm:$0xff] %v52
      %58 = vst [vmem:[#allocation2 + $0x18] sm:$0xff] %v54
    $region25: #{tpu_custom_call.1} parent=1 // pred_fallthru
      _
    %s59 = smul.u32 0, 32
    %s60 = scalar_lea.vmem [#allocation2], %s59
    %v61 = vld [vmem:[%s60] sm:$0xff]
    %v62 = vld [vmem:[%s60 + $0x8] sm:$0xff]
    %v63 = vld [vmem:[%s60 + $0x10] sm:$0xff]
    %v64 = vld [vmem:[%s60 + $0x18] sm:$0xff]
    %v65 = vld [vmem:[#allocation2] sm:$0xff]
    %v66 = vld [vmem:[#allocation2 + $0x8] sm:$0xff]
    %v67 = vld [vmem:[#allocation2 + $0x10] sm:$0xff]
    %v68 = vld [vmem:[#allocation2 + $0x18] sm:$0xff]
    %69 = vmatprep.subr.mxu0 0.0
    %70 = vmatpush1.xpose.msra.mxu0 %v65
    %71 = vmatprep.subr.mxu0 0.0
    %72 = vmatpush1.xpose.msra.mxu0 %v66
    %73 = vmatprep.subr.mxu0 0.0
    %74 = vmatpush1.xpose.msra.mxu0 %v67
    %75 = vmatprep.subr.mxu0 0.0
    %76 = vmatpush1.xpose.msra.mxu0 %v68
    %77 = vmatprep.subr.mxu0 0.0
    %78 = vmatpush1.xpose.msra.mxu0 0.0
    %79 = vmatprep.subr.mxu0 0.0
    %80 = vmatpush1.xpose.msra.mxu0 0.0
    %81 = vmatprep.subr.mxu0 0.0
    %82 = vmatpush1.xpose.msra.mxu0 0.0
    %83 = vmatprep.subr.mxu0 0.0
    %84 = vmatpush1.xpose.msra.mxu0 0.0
    %85 = vmatprep.subr.mxu0 0.0
    %86 = vmatpush1.xpose.msra.mxu0 0.0
    %87 = vmatprep.subr.mxu0 0.0
    %88 = vmatpush1.xpose.msra.mxu0 0.0
    %89 = vmatprep.subr.mxu0 0.0
    %90 = vmatpush1.xpose.msra.mxu0 0.0
    %91 = vmatprep.subr.mxu0 0.0
    %92 = vmatpush1.xpose.msra.mxu0 0.0
    %93 = vmatprep.subr.mxu0 0.0
    %94 = vmatpush1.xpose.msra.mxu0 0.0
    %95 = vmatprep.subr.mxu0 0.0
    %96 = vmatpush1.xpose.msra.mxu0 0.0
    %97 = vmatprep.subr.mxu0 0.0
    %98 = vmatpush1.xpose.msra.mxu0 0.0
    %99 = vmatprep.subr.mxu0 0.0
    %100 = vmatpush1.xpose.msra.mxu0 0.0
    %101 = vmatprep.subr.mxu0 0.0
    %102 = vmatpush1.xpose.msra.mxu0 0.0
    %103 = vmatprep.subr.mxu0 0.0
    %104 = vmatpush1.xpose.msra.mxu0 0.0
    %105 = vmatprep.subr.mxu0 0.0
    %106 = vmatpush1.xpose.msra.mxu0 0.0
    %107 = vmatprep.subr.mxu0 0.0
    %108 = vmatpush1.xpose.msra.mxu0 0.0
    %109 = vmatprep.subr.mxu0 0.0
    %110 = vmatpush1.xpose.msra.mxu0 0.0
    %111 = vmatprep.subr.mxu0 0.0
    %112 = vmatpush1.xpose.msra.mxu0 0.0
    %113 = vmatprep.subr.mxu0 0.0
    %114 = vmatpush1.xpose.msra.mxu0 0.0
    %115 = vmatprep.subr.mxu0 0.0
    %116 = vmatpush1.xpose.msra.mxu0 0.0
    %117 = vmatprep.subr.mxu0 0.0
    %118 = vmatpush1.xpose.msra.mxu0 0.0
    %119 = vmatprep.subr.mxu0 0.0
    %120 = vmatpush1.xpose.msra.mxu0 0.0
    %121 = vmatprep.subr.mxu0 0.0
    %122 = vmatpush1.xpose.msra.mxu0 0.0
    %123 = vmatprep.subr.mxu0 0.0
    %124 = vmatpush1.xpose.msra.mxu0 0.0
    %125 = vmatprep.subr.mxu0 0.0
    %126 = vmatpush1.xpose.msra.mxu0 0.0
    %127 = vmatprep.subr.mxu0 0.0
    %128 = vmatpush1.xpose.msra.mxu0 0.0
    %129 = vmatprep.subr.mxu0 0.0
    %130 = vmatpush1.xpose.msra.mxu0 0.0
    %131 = vmatprep.subr.mxu0 0.0
    %132 = vmatpush1.xpose.msra.mxu0 0.0
    %133 = vmatprep.mubr.f32.mxu0 0.0
    %134 = vmatmul.mubr.f32.gmra.mrb[0].mxu0 %v61
    %v135 = vpop.f32.mrb[0].mxu0
    %v136 = vadd.f32 0.0, %v135
    %v137 = vpop.f32.mrb[0].mxu0
    %138 = vmatprep.mubr.f32.mxu0 0.0
    %139 = vmatmul.mubr.f32.gmra.mrb[0].mxu0 %v62
    %v140 = vpop.f32.mrb[0].mxu0
    %v141 = vadd.f32 0.0, %v140
    %v142 = vpop.f32.mrb[0].mxu0
    %143 = vmatprep.mubr.f32.mxu0 0.0
    %144 = vmatmul.mubr.f32.gmra.mrb[0].mxu0 %v63
    %v145 = vpop.f32.mrb[0].mxu0
    %v146 = vadd.f32 0.0, %v145
    %v147 = vpop.f32.mrb[0].mxu0
    %148 = vmatprep.mubr.f32.mxu0 0.0
    %149 = vmatmul.mubr.f32.gmra.mrb[0].mxu0 %v64
    %v150 = vpop.f32.mrb[0].mxu0
    %v151 = vadd.f32 0.0, %v150
    %v152 = vpop.f32.mrb[0].mxu0
    %153 = vdwg.mxu0
    %v154 = vmax.f32 %v136, 0.0
    %v155 = vmax.f32 %v141, 0.0
    %v156 = vmax.f32 %v146, 0.0
    %v157 = vmax.f32 %v151, 0.0
    %v158 = vand.u32 2147483647, %v136
    %v159 = vand.u32 2147483647, %v141
    %v160 = vand.u32 2147483647, %v146
    %v161 = vand.u32 2147483647, %v151
    %v162 = vsub.f32 0.0, %v158
    %v163 = vsub.f32 0.0, %v159
    %v164 = vsub.f32 0.0, %v160
    %v165 = vsub.f32 0.0, %v161
    %v166 = vmul.f32 %v162, 1.442695
    %v167 = vpow.pop %v166
    %v168 = vmul.f32 %v163, 1.442695
    %v169 = vpow.pop %v168
    %v170 = vmul.f32 %v164, 1.442695
    %v171 = vpow.pop %v170
    %v172 = vmul.f32 %v165, 1.442695
    %v173 = vpow.pop %v172
    %v174 = vadd.f32 %v167, 1.0
    %v175 = vlog2.pop %v174
    %v176 = vmul.f32 %v175, 0.6931472
    %v177 = vmul.f32 -0.5, %v167
    %v178 = vadd.f32 %v177, 1.0
    %v179 = vmul.f32 %v178, %v167
    %v180 = vand.u32 2147483647, %v167
    %vm181 = vcmp.lt.f32.partialorder %v180, 0.0004427343
    %v182 = vsel %vm181, %v179, %v176
    %v183 = vadd.f32 %v169, 1.0
    %v184 = vlog2.pop %v183
    %v185 = vmul.f32 %v184, 0.6931472
    %v186 = vmul.f32 -0.5, %v169
    %v187 = vadd.f32 %v186, 1.0
    %v188 = vmul.f32 %v187, %v169
    %v189 = vand.u32 2147483647, %v169
    %vm190 = vcmp.lt.f32.partialorder %v189, 0.0004427343
    %v191 = vsel %vm190, %v188, %v185
    %v192 = vadd.f32 %v171, 1.0
    %v193 = vlog2.pop %v192
    %v194 = vmul.f32 %v193, 0.6931472
    %v195 = vmul.f32 -0.5, %v171
    %v196 = vadd.f32 %v195, 1.0
    %v197 = vmul.f32 %v196, %v171
    %v198 = vand.u32 2147483647, %v171
    %vm199 = vcmp.lt.f32.partialorder %v198, 0.0004427343
    %v200 = vsel %vm199, %v197, %v194
    %v201 = vadd.f32 %v173, 1.0
    %v202 = vlog2.pop %v201
    %v203 = vmul.f32 %v202, 0.6931472
    %v204 = vmul.f32 -0.5, %v173
    %v205 = vadd.f32 %v204, 1.0
    %v206 = vmul.f32 %v205, %v173
    %v207 = vand.u32 2147483647, %v173
    %vm208 = vcmp.lt.f32.partialorder %v207, 0.0004427343
    %v209 = vsel %vm208, %v206, %v203
    %v210 = vadd.f32 %v154, %v182
    %v211 = vadd.f32 %v155, %v191
    %v212 = vadd.f32 %v156, %v200
    %v213 = vadd.f32 %v157, %v209
    %v214 = vld [vmem:[%s1] sm:$0x1]
    %s215 = scalar_lea.vmem %s2, %s59
    %v216 = vld [vmem:[%s215] sm:$0xff]
    %v217 = vld [vmem:[%s215 + $0x8] sm:$0xff]
    %v218 = vld [vmem:[%s215 + $0x10] sm:$0xff]
    %v219 = vld [vmem:[%s215 + $0x18] sm:$0xff]
    %s220 = scalar_lea.vmem %s3, %s59
    %v221 = vld [vmem:[%s220] sm:$0xff]
    %v222 = vld [vmem:[%s220 + $0x8] sm:$0xff]
    %v223 = vld [vmem:[%s220 + $0x10] sm:$0xff]
    %v224 = vld [vmem:[%s220 + $0x18] sm:$0xff]
    %v225 = vld [vmem:[%s4] sm:$0x1]
    %227 = vset.pattern.permute.xlu0 0
    %228 = vperm.xlu0 %227, %v221
    %v229 = vpop.permute.xlu0 %228
    %232 = vset.pattern.permute.xlu0 0
    %233 = vperm.xlu0 %232, %v222
    %v234 = vpop.permute.xlu0 %233
    %237 = vset.pattern.permute.xlu0 0
    %238 = vperm.xlu0 %237, %v223
    %v239 = vpop.permute.xlu0 %238
    %242 = vset.pattern.permute.xlu0 0
    %243 = vperm.xlu0 %242, %v224
    %v244 = vpop.permute.xlu0 %243
    %v247 = vlaneseq
    %v248 = vshrl.u32 %v247, 7
    %v249 = vsub.s32 0, %v248
    %v250 = vrot.slane %v225, %v249
    %vm252 = vcmp.eq.f32.partialorder %v229, %v250
    %vm253 = vcmp.eq.f32.partialorder %v234, %v250
    %vm254 = vcmp.eq.f32.partialorder %v239, %v250
    %vm255 = vcmp.eq.f32.partialorder %v244, %v250
    %v256 = vsel %vm252, 1, 0
    %v257 = vsel %vm253, 1, 0
    %v258 = vsel %vm254, 1, 0
    %v259 = vsel %vm255, 1, 0
    %v260 = vcvt.s32.f32 %v256
    %v261 = vcvt.s32.f32 %v257
    %v262 = vcvt.s32.f32 %v258
    %v263 = vcvt.s32.f32 %v259
    %v265 = vlaneseq
    %v266 = vshrl.u32 %v265, 7
    %v267 = vsub.s32 0, %v266
    %v268 = vrot.slane %v214, %v267
    %v270 = vmul.f32 %v268, %v210
    %v271 = vmul.f32 %v268, %v211
    %v272 = vmul.f32 %v268, %v212
    %v273 = vmul.f32 %v268, %v213
    %v274 = vmul.f32 %v260, %v136
    %v275 = vmul.f32 %v261, %v141
    %v276 = vmul.f32 %v262, %v146
    %v277 = vmul.f32 %v263, %v151
    %v278 = vsub.f32 %v270, %v274
    %v279 = vsub.f32 %v271, %v275
    %v280 = vsub.f32 %v272, %v276
    %v281 = vsub.f32 %v273, %v277
    %283 = vset.pattern.permute.xlu0 0
    %284 = vperm.xlu0 %283, %v216
    %v285 = vpop.permute.xlu0 %284
    %288 = vset.pattern.permute.xlu0 0
    %289 = vperm.xlu0 %288, %v217
    %v290 = vpop.permute.xlu0 %289
    %293 = vset.pattern.permute.xlu0 0
    %294 = vperm.xlu0 %293, %v218
    %v295 = vpop.permute.xlu0 %294
    %298 = vset.pattern.permute.xlu0 0
    %299 = vperm.xlu0 %298, %v219
    %v300 = vpop.permute.xlu0 %299
    %v302 = vmul.f32 %v285, %v278
    %v303 = vmul.f32 %v290, %v279
    %v304 = vmul.f32 %v295, %v280
    %v305 = vmul.f32 %v300, %v281
    %s306 = sld [smem:[#allocation3]]
    %vm307 = vcmask 261120
    %v308 = vsel %vm307, %v302, 0.0
    %v309 = vsel %vm307, %v303, 0.0
    %v310 = vadd.f32 %v308, %v309
    %v311 = vsel %vm307, %v304, 0.0
    %v312 = vadd.f32 %v310, %v311
    %v313 = vsel %vm307, %v305, 0.0
    %v314 = vadd.f32 %v312, %v313
    %315 = vadd.xlane.f32.xlu0 %v314
    %v316 = vpop.xlane.xlu0 %315
    %v317 = vrot.slane %v316, 4
    %v318 = vadd.f32 %v316, %v317
    %v319 = vrot.slane %v318, 2
    %v320 = vadd.f32 %v318, %v319
    %v321 = vrot.slane %v320, 1
    %v322 = vadd.f32 %v320, %v321
    %s323 = vtos %v322
    %s324 = sadd.f32 %s306, %s323
    %s325 = scalar_lea.smem [#allocation3], 0
    %326 = sst [smem:[%s325]] %s324
    // Predicated region
    $region26: #{tpu_custom_call.1} parent=1 // pred_check
      _
    $region27: #{tpu_custom_call.1} parent=1 // pred_check_branch
      %328 = sbr.rel (0) target = $region29
    $region28: #{tpu_custom_call.1} parent=1 // pred_region
      %s330 = ssub.s32 16, 16
      %331 = vsyncadd [#allocation4], %s330
      %334 = dma.smem_to_hbm [#allocation3], 16, %s5, [#allocation4]
    $region29: #{tpu_custom_call.1} parent=1 // pred_fallthru
      _
    // Predicated region
    $region30: #{tpu_custom_call.1} parent=1 // pred_check
      _
    $region31: #{tpu_custom_call.1} parent=1 // pred_check_branch
      %336 = sbr.rel (0) target = $region33
    $region32: #{tpu_custom_call.1} parent=1 // pred_region
      %337 = dma.done [#allocation4], 16
    $region33: #{tpu_custom_call.1} parent=1 // pred_fallthru
      _
    %338 = sfence
    %339 = vsyncpa [#allocation4], 1

</llo_original>
